<compile_context>
chip_gen: v6e
topology: v6e:2x2x1
jax: 0.10.0
libtpu: 0.0.40
codegen_flags: <defaults>
</compile_context>

<pallas_src>
import functools

import jax
import jax.numpy as jnp
from jax.experimental import pallas as pl
from jax.experimental.pallas import tpu as pltpu

LANES = 128


# ----------------------------------------------------------------------------- RNG
def _bit_reverse(i, nbits):
    r = 0
    for b in range(nbits):
        r = (r << 1) | ((i >> b) & 1)
    return r


def make_sobol_rng(depth):
    # 1-D Sobol sequence (dim=1) == base-2 radical inverse (van der Corput),
    # scaled by 2**depth -> whole numbers in [0, 2**depth), matching
    # UnarySim RNG(depth, rng_dim=1, "Sobol") up to sequence ordering.
    # TODO(synk): exact torch.quasirandom.SobolEngine ordering not reproduced bit-for-bit.
    seq_len = 2 ** depth
    vals = [float(_bit_reverse(i, depth)) for i in range(seq_len)]
    return jnp.asarray(vals, dtype=jnp.float32)


# ----------------------------------------------------------------------------- tiling
def _pick_tile_rows(rows, cap=1024):
    """Largest multiple of 8 that divides `rows` and is <= cap."""
    t = min(rows, cap)
    t -= t % 8
    t = max(t, 8)
    while rows % t != 0:
        t -= 8
    return t


# ----------------------------------------------------------------------------- kernel
def _gaines_sqrt_kernel(rng_ref, x_ref, scnt_in_ref, outd_in_ref,
                        out_ref, newscnt_ref,
                        scnt_scr, outd_scr,
                        *, scnt_max, bipolar):
    # grid = (row_tiles, K); k (cycle index) is the inner, "arbitrary" axis.
    k = pl.program_id(1)

    # Load the threaded state once per row-tile; it stays resident in VMEM across K cycles.
    @pl.when(k == 0)
    def _():
        scnt_scr[...] = scnt_in_ref[...]
        outd_scr[...] = outd_in_ref[...]

    rng_val = rng_ref[k].astype(jnp.float32)   # SMEM scalar (prefetched)
    scnt = scnt_scr[...]                       # f32 counter state
    out_d = outd_scr[...]                      # previous output bit (0/1) as f32
    inc = x_ref[...]                           # inc = input.float()

    # output = (scnt > rng_val) as a 0/1 bit, broadcast over the input shape
    out_bit = (scnt > rng_val).astype(jnp.float32)

    if bipolar:
        # torch: dec = (1 - output ^ out_d)  ==  ((1 - output) ^ out_d)   (python precedence)
        not_out = 1.0 - out_bit
        dec = not_out + out_d - 2.0 * not_out * out_d   # xor of 0/1 bits in float
    else:
        # unipolar: dec = output & out_d
        dec = out_bit * out_d

    # scnt <- scnt + inc ; scnt <- scnt - dec ; clamp(0, scnt_max)
    # (inc*(scnt+1)+(1-inc)*scnt == scnt+inc, dec*(scnt-1)+(1-dec)*scnt == scnt-dec)
    new_scnt = jnp.clip(scnt + inc - dec, 0.0, scnt_max)

    out_ref[...] = out_bit                     # stype == float; per-cycle output plane
    scnt_scr[...] = new_scnt
    outd_scr[...] = out_bit                    # out_d <- output (kept only in VMEM)

    # Write the final counter state back to HBM once, on the last cycle.
    @pl.when(k == pl.num_programs(1) - 1)
    def _():
        newscnt_ref[...] = new_scnt


# ----------------------------------------------------------------------------- wrappers
def gaines_sqrt_steps(xs, scnt, out_d, rng_seq, rng_idx, *,
                      depth=5, mode="bipolar", max_tile_rows=1024):
    """K fused forward() calls of GainesSqrt.

    xs: (K, *elem_shape) per-cycle input bit-planes.
    Returns (outputs (K, *elem_shape), new_scnt, new_out_d, new_rng_idx).
    """
    K = xs.shape[0]
    elem_shape = xs.shape[1:]
    total = 1
    for d in elem_shape:
        total *= d
    # TODO(synk): non-conforming shapes would need padding / a masked last block.
    assert total % (8 * LANES) == 0, "demo assumes total elements divisible by 8*128"
    R, C = total // LANES, LANES
    tile_r = _pick_tile_rows(R, max_tile_rows)

    f32 = jnp.float32
    x2 = xs.reshape(K, R, C)
    scnt2 = scnt.reshape(R, C)
    outd2 = out_d.reshape(R, C)
    # Only cast if needed (cast-in-wrapper would otherwise add hidden full-tensor copies).
    if x2.dtype != f32:
        x2 = x2.astype(f32)
    if scnt2.dtype != f32:
        scnt2 = scnt2.astype(f32)
    if outd2.dtype != f32:
        outd2 = outd2.astype(f32)

    # rng values are exact integers (radical inverse * 2**depth) -> lossless int32 scalars
    n = rng_seq.shape[0]
    idxs = (rng_idx + jnp.arange(K)) % n
    rng_vals = jnp.take(rng_seq, idxs).astype(jnp.int32)

    scnt_max = float(2 ** depth - 1)
    kernel = functools.partial(_gaines_sqrt_kernel,
                               scnt_max=scnt_max,
                               bipolar=(mode == "bipolar"))

    # Per-cycle planes: block index changes along k -> streamed every cycle.
    plane_spec = pl.BlockSpec((None, tile_r, C), lambda i, k, rng: (k, i, 0))
    # State arrays: block index constant along k -> fetched/written once per row-tile.
    state_spec = pl.BlockSpec((tile_r, C), lambda i, k, rng: (i, 0))

    bytes_accessed = 4 * R * C * (2 * K + 3)   # K*x + K*out + scnt_in + outd_in + scnt_out
    out, new_scnt = pl.pallas_call(
        kernel,
        out_shape=(jax.ShapeDtypeStruct((K, R, C), f32),
                   jax.ShapeDtypeStruct((R, C), f32)),
        grid_spec=pltpu.PrefetchScalarGridSpec(
            num_scalar_prefetch=1,
            grid=(R // tile_r, K),
            in_specs=[plane_spec, state_spec, state_spec],
            out_specs=(plane_spec, state_spec),
            scratch_shapes=[pltpu.VMEM((tile_r, C), f32),    # resident scnt state
                            pltpu.VMEM((tile_r, C), f32)],   # resident out_d state
        ),
        compiler_params=pltpu.CompilerParams(
            dimension_semantics=("parallel", "arbitrary")),
        cost_estimate=pl.CostEstimate(flops=8 * K * R * C,
                                      transcendentals=0,
                                      bytes_accessed=bytes_accessed),
    )(rng_vals, x2, scnt2, outd2)

    outs = out.reshape((K,) + elem_shape)
    new_scnt = new_scnt.reshape(elem_shape)
    new_outd = outs[-1]                        # out_d <- last output bit plane
    return outs, new_scnt, new_outd, rng_idx + K


def gaines_sqrt_step(x, scnt, out_d, rng_seq, rng_idx, *, depth=5, mode="bipolar"):
    """One forward() of GainesSqrt (K=1 specialization of the fused kernel)."""
    outs, new_scnt, new_outd, new_idx = gaines_sqrt_steps(
        x[None], scnt, out_d, rng_seq, rng_idx, depth=depth, mode=mode)
    return outs[0], new_scnt, new_outd, new_idx


# ----------------------------------------------------------------------------- reference
def gaines_sqrt_ref(x, scnt, out_d, rng_val, scnt_max, mode):
    out_bit = (scnt > rng_val).astype(jnp.float32)
    if mode == "bipolar":
        dec = jnp.logical_xor((1.0 - out_bit).astype(bool),
                              out_d.astype(bool)).astype(jnp.float32)
    else:
        dec = out_bit * out_d
    new_scnt = jnp.clip(scnt + x.astype(jnp.float32) - dec, 0.0, scnt_max)
    return out_bit, new_scnt, out_bit


# ----------------------------------------------------------------------------- main
if __name__ == "__main__":
    depth = 5
    mode = "bipolar"
    K = 4

    key = jax.random.PRNGKey(0)
    # Gaines sqrt consumes a stochastic bitstream -> deterministic 0/1 input bits.
    x = (jax.random.uniform(key, (2, 4, 16, 16)) < 0.5).astype(jnp.float32)

    rng_seq = make_sobol_rng(depth)                                   # shape (32,)
    # initial state (per-element, equivalent to the module's scalar params broadcast)
    scnt0 = jnp.full(x.shape, float(2 ** (depth - 1)), dtype=jnp.float32)
    outd0 = jnp.zeros(x.shape, dtype=jnp.float32)
    scnt_max = float(2 ** depth - 1)

    ok = True

    # ---- single forward() (module semantics), K=1 path --------------------------------
    o1, s1, d1, _ = gaines_sqrt_step(x, scnt0, outd0, rng_seq, 0, depth=depth, mode=mode)
    o1 = jax.block_until_ready(o1)
    r_o1, r_s1, r_d1 = gaines_sqrt_ref(x, scnt0, outd0, rng_seq[0], scnt_max, mode)
    ok &= bool(jnp.allclose(o1, r_o1))
    ok &= bool(jnp.allclose(s1, r_s1))
    ok &= bool(jnp.allclose(d1, r_d1))

    # ---- K fused bitstream cycles (state stays resident in VMEM) ----------------------
    xs = jnp.stack([x] * K)                    # same input bit each cycle, as in the demo
    outs, new_scnt, new_outd, rng_idx = gaines_sqrt_steps(
        xs, scnt0, outd0, rng_seq, 0, depth=depth, mode=mode)
    outs = jax.block_until_ready(outs)

    scnt_r, outd_r = scnt0, outd0
    for k in range(K):
        rv = rng_seq[k % rng_seq.shape[0]]
        o_r, scnt_r, outd_r = gaines_sqrt_ref(x, scnt_r, outd_r, rv, scnt_max, mode)
        ok &= bool(jnp.allclose(outs[k], o_r))
    ok &= bool(jnp.allclose(new_scnt, scnt_r))
    ok &= bool(jnp.allclose(new_outd, outd_r))
    ok &= (rng_idx == K)

    if not ok:
        raise AssertionError("Pallas kernel does not match reference")
    print("KERNEL_OK")
</pallas_src>

<mosaic_0001>
module attributes {stable_mosaic.version = 11 : i64} {
  func.func @_gaines_sqrt_kernel(%arg0: i32, %arg1: i32, %arg2: memref<1xi32, #tpu.memory_space<smem>>, %arg3: memref<1x16x128xf32, #tpu.memory_space<vmem>>, %arg4: memref<16x128xf32, #tpu.memory_space<vmem>>, %arg5: memref<16x128xf32, #tpu.memory_space<vmem>>, %arg6: memref<1x16x128xf32, #tpu.memory_space<vmem>>, %arg7: memref<16x128xf32, #tpu.memory_space<vmem>>, %arg8: memref<16x128xf32, #tpu.memory_space<vmem>>, %arg9: memref<16x128xf32, #tpu.memory_space<vmem>>) attributes {dimension_semantics = [#tpu.dimension_semantics<parallel>, #tpu.dimension_semantics<arbitrary>], iteration_bounds = array<i64: 1, 1>, scalar_prefetch = 1 : i64, scratch_operands = 2 : i64, tpu.core_type = #tpu.core_type<tc>, window_params = [{transform_indices = @transform_0, window_bounds = array<i64: 1, 16, 128>}, {transform_indices = @transform_1, window_bounds = array<i64: 16, 128>}, {transform_indices = @transform_2, window_bounds = array<i64: 16, 128>}, {transform_indices = @transform_3, window_bounds = array<i64: 1, 16, 128>}, {transform_indices = @transform_4, window_bounds = array<i64: 16, 128>}]} {
    %c0_i32 = arith.constant 0 : i32
    %0 = arith.cmpi eq, %arg1, %c0_i32 : i32
    %1 = arith.extui %0 : i1 to i32
    %c0_i32_0 = arith.constant 0 : i32
    %2 = arith.cmpi ne, %1, %c0_i32_0 : i32
    scf.if %2 {
      %c0_19 = arith.constant 0 : index
      %c0_20 = arith.constant 0 : index
      %35 = vector.load %arg4[%c0_19, %c0_20] : memref<16x128xf32, #tpu.memory_space<vmem>>, vector<16x128xf32>
      %c0_21 = arith.constant 0 : index
      %c0_22 = arith.constant 0 : index
      %36 = vector.load %arg8[%c0_21, %c0_22] : memref<16x128xf32, #tpu.memory_space<vmem>>, vector<16x128xf32>
      tpu.vector_store %arg8[%c0_21, %c0_22], %35 {strides = array<i32>} : memref<16x128xf32, #tpu.memory_space<vmem>>, vector<16x128xf32>,
      %c0_23 = arith.constant 0 : index
      %c0_24 = arith.constant 0 : index
      %37 = vector.load %arg5[%c0_23, %c0_24] : memref<16x128xf32, #tpu.memory_space<vmem>>, vector<16x128xf32>
      %c0_25 = arith.constant 0 : index
      %c0_26 = arith.constant 0 : index
      %38 = vector.load %arg9[%c0_25, %c0_26] : memref<16x128xf32, #tpu.memory_space<vmem>>, vector<16x128xf32>
      tpu.vector_store %arg9[%c0_25, %c0_26], %37 {strides = array<i32>} : memref<16x128xf32, #tpu.memory_space<vmem>>, vector<16x128xf32>,
    } else {
    }
    %3 = arith.index_cast %arg1 : i32 to index
    %4 = memref.load %arg2[%3] : memref<1xi32, #tpu.memory_space<smem>>
    %5 = arith.sitofp %4 : i32 to f32
    %c0 = arith.constant 0 : index
    %c0_1 = arith.constant 0 : index
    %6 = vector.load %arg8[%c0, %c0_1] : memref<16x128xf32, #tpu.memory_space<vmem>>, vector<16x128xf32>
    %c0_2 = arith.constant 0 : index
    %c0_3 = arith.constant 0 : index
    %7 = vector.load %arg9[%c0_2, %c0_3] : memref<16x128xf32, #tpu.memory_space<vmem>>, vector<16x128xf32>
    %c0_4 = arith.constant 0 : index
    %c0_5 = arith.constant 0 : index
    %c0_6 = arith.constant 0 : index
    %8 = vector.load %arg3[%c0_4, %c0_5, %c0_6] : memref<1x16x128xf32, #tpu.memory_space<vmem>>, vector<1x16x128xf32>
    %9 = vector.shape_cast %8 : vector<1x16x128xf32> to vector<16x128xf32>
    %10 = vector.broadcast %5 : f32 to vector<16x128xf32>
    %11 = arith.cmpf ogt, %6, %10 : vector<16x128xf32>
    %12 = arith.extui %11 : vector<16x128xi1> to vector<16x128xi32>
    %13 = arith.sitofp %12 : vector<16x128xi32> to vector<16x128xf32>
    %cst = arith.constant 1.000000e+00 : f32
    %14 = vector.broadcast %cst : f32 to vector<16x128xf32>
    %15 = arith.subf %14, %13 : vector<16x128xf32>
    %16 = arith.addf %15, %7 : vector<16x128xf32>
    %cst_7 = arith.constant 2.000000e+00 : f32
    %17 = vector.broadcast %cst_7 : f32 to vector<16x128xf32>
    %18 = arith.mulf %17, %15 : vector<16x128xf32>
    %19 = arith.mulf %18, %7 : vector<16x128xf32>
    %20 = arith.subf %16, %19 : vector<16x128xf32>
    %21 = arith.addf %6, %9 : vector<16x128xf32>
    %22 = arith.subf %21, %20 : vector<16x128xf32>
    %cst_8 = arith.constant 0.000000e+00 : f32
    %cst_9 = arith.constant 3.100000e+01 : f32
    %23 = vector.broadcast %cst_8 : f32 to vector<16x128xf32>
    %24 = arith.maximumf %23, %22 : vector<16x128xf32>
    %25 = vector.broadcast %cst_9 : f32 to vector<16x128xf32>
    %26 = arith.minimumf %25, %24 : vector<16x128xf32>
    %c0_10 = arith.constant 0 : index
    %c0_11 = arith.constant 0 : index
    %c0_12 = arith.constant 0 : index
    %27 = vector.load %arg6[%c0_10, %c0_11, %c0_12] : memref<1x16x128xf32, #tpu.memory_space<vmem>>, vector<1x16x128xf32>
    %28 = vector.shape_cast %27 : vector<1x16x128xf32> to vector<16x128xf32>
    %29 = vector.shape_cast %13 : vector<16x128xf32> to vector<1x16x128xf32>
    tpu.vector_store %arg6[%c0_10, %c0_11, %c0_12], %29 {strides = array<i32>} : memref<1x16x128xf32, #tpu.memory_space<vmem>>, vector<1x16x128xf32>,
    %c0_13 = arith.constant 0 : index
    %c0_14 = arith.constant 0 : index
    %30 = vector.load %arg8[%c0_13, %c0_14] : memref<16x128xf32, #tpu.memory_space<vmem>>, vector<16x128xf32>
    tpu.vector_store %arg8[%c0_13, %c0_14], %26 {strides = array<i32>} : memref<16x128xf32, #tpu.memory_space<vmem>>, vector<16x128xf32>,
    %c0_15 = arith.constant 0 : index
    %c0_16 = arith.constant 0 : index
    %31 = vector.load %arg9[%c0_15, %c0_16] : memref<16x128xf32, #tpu.memory_space<vmem>>, vector<16x128xf32>
    tpu.vector_store %arg9[%c0_15, %c0_16], %13 {strides = array<i32>} : memref<16x128xf32, #tpu.memory_space<vmem>>, vector<16x128xf32>,
    %c0_i32_17 = arith.constant 0 : i32
    %32 = arith.cmpi eq, %arg1, %c0_i32_17 : i32
    %33 = arith.extui %32 : i1 to i32
    %c0_i32_18 = arith.constant 0 : i32
    %34 = arith.cmpi ne, %33, %c0_i32_18 : i32
    scf.if %34 {
      %c0_19 = arith.constant 0 : index
      %c0_20 = arith.constant 0 : index
      %35 = vector.load %arg7[%c0_19, %c0_20] : memref<16x128xf32, #tpu.memory_space<vmem>>, vector<16x128xf32>
      tpu.vector_store %arg7[%c0_19, %c0_20], %26 {strides = array<i32>} : memref<16x128xf32, #tpu.memory_space<vmem>>, vector<16x128xf32>,
    } else {
    }
    return
  }
  func.func @transform_0(%arg0: i32, %arg1: i32, %arg2: memref<1xi32, #tpu.memory_space<smem>>) -> (i32, i32, i32) {
    %c0_i32 = arith.constant 0 : i32
    %c0_i32_0 = arith.constant 0 : i32
    return %arg1, %arg0, %c0_i32 : i32, i32, i32
  }
  func.func @transform_1(%arg0: i32, %arg1: i32, %arg2: memref<1xi32, #tpu.memory_space<smem>>) -> (i32, i32) {
    %c0_i32 = arith.constant 0 : i32
    %c0_i32_0 = arith.constant 0 : i32
    return %arg0, %c0_i32 : i32, i32
  }
  func.func @transform_2(%arg0: i32, %arg1: i32, %arg2: memref<1xi32, #tpu.memory_space<smem>>) -> (i32, i32) {
    %c0_i32 = arith.constant 0 : i32
    %c0_i32_0 = arith.constant 0 : i32
    return %arg0, %c0_i32 : i32, i32
  }
  func.func @transform_3(%arg0: i32, %arg1: i32, %arg2: memref<1xi32, #tpu.memory_space<smem>>) -> (i32, i32, i32) {
    %c0_i32 = arith.constant 0 : i32
    %c0_i32_0 = arith.constant 0 : i32
    return %arg1, %arg0, %c0_i32 : i32, i32, i32
  }
  func.func @transform_4(%arg0: i32, %arg1: i32, %arg2: memref<1xi32, #tpu.memory_space<smem>>) -> (i32, i32) {
    %c0_i32 = arith.constant 0 : i32
    %c0_i32_0 = arith.constant 0 : i32
    return %arg0, %c0_i32 : i32, i32
  }
}

</mosaic_0001>

<llo_original>
// kernel: tpu_custom_call.1
$region0: #{tpu_custom_call.1}
  #allocation0 [shape = 'u32[]', space=smem, size = 0x4, offset = 0x4, fixed_abs, tag = 'smem constant byte address 0x4 - core index']
  #allocation1 [shape = 'u32[144,128]{1,0:T(1,128)}', space=vmem, size = 0x12000, scoped, tag = 'internal scratch']
  #allocation2 [shape = 'f32[16,128]{1,0:T(8,128)}', space=vmem, size = 0x2000, scoped, tag = 'scratch operand']
  #allocation3 [shape = 'f32[16,128]{1,0:T(8,128)}', space=vmem, size = 0x2000, scoped, tag = 'scratch operand']
  #allocation4 [shape = 's32[1]{0}', space=sflag, size = 0x4, scoped, tag = 'scoped memory for tpu_custom_call.1']
  #allocation5 [shape = 's32[1]{0:T(128)S(6)}', space=smem, size = 0x200, scoped, tag = 'prefetched SMEM operand 0']
  %s0 = inlined_call_operand.<no memory space> [shape: s32[1], index: 0, kind: input, shape index: {}]
  %s1 = inlined_call_operand.hbm [shape: f32[1,16,128], index: 1, kind: input, shape index: {}]
  %s2 = inlined_call_operand.hbm [shape: f32[16,128], index: 2, kind: input, shape index: {}]
  %s3 = inlined_call_operand.hbm [shape: f32[16,128], index: 3, kind: input, shape index: {}]
  %s4 = inlined_call_operand.hbm [shape: f32[1,16,128], index: 4, kind: output, shape index: {0}]
  %s5 = inlined_call_operand.hbm [shape: f32[16,128], index: 5, kind: output, shape index: {1}]
  %6 = xla_tuple %s4, %s5
  %s7 = sld [smem:[#allocation0]]
  $region50: #{tpu_custom_call.1} parent=0
    _
  %s9 = ssub.s32 1, %s7
  %s10 = scalar_select 0, %s9, %s7
  %11 = sst [smem:[#allocation5]] %s0
  $region1: #{tpu_custom_call.1} parent=0
    #allocation6 [shape = 'u8[8192]{0}', space=vmem, size = 0x2000, scoped, tag = 'input window, operand 1, single buffered']
    #allocation7 [shape = 's32[1]{0}', space=sflag, size = 0x4, scoped, tag = 'scoped memory for tpu_custom_call.1']
    #allocation8 [shape = 's32[1]{0}', space=sflag, size = 0x4, scoped, tag = 'scoped memory for tpu_custom_call.1']
    #allocation9 [shape = 'u8[8192]{0}', space=vmem, size = 0x2000, scoped, tag = 'input window, operand 2, single buffered']
    #allocation10 [shape = 's32[1]{0}', space=sflag, size = 0x4, scoped, tag = 'scoped memory for tpu_custom_call.1']
    #allocation11 [shape = 'u8[8192]{0}', space=vmem, size = 0x2000, scoped, tag = 'input window, operand 3, single buffered']
    #allocation12 [shape = 'u8[8192]{0}', space=vmem, size = 0x2000, scoped, tag = 'output window, operand 0, single buffered']
    #allocation13 [shape = 'u8[8192]{0}', space=vmem, size = 0x2000, scoped, tag = 'output window, operand 1, single buffered']
    #allocation14 [shape = 's32[1]{0}', space=sflag, size = 0x4, scoped, tag = 'scoped memory for tpu_custom_call.1']
    %12 = vsyncpa [#allocation7], 0
    %13 = vsyncpa [#allocation10], 0
    %14 = vsyncpa [#allocation8], 0
    %15 = vsyncpa [#allocation14], 0
    // Predicated region
    $region2: #{tpu_custom_call.1} parent=1 // pred_check
      _
    $region3: #{tpu_custom_call.1} parent=1 // pred_check_branch
      %17 = sbr.rel (0) target = $region5
    $region4: #{tpu_custom_call.1} parent=1 // pred_region
      %s19 = ssub.s32 256, 256
      %20 = vsyncadd [#allocation7], %s19
      %s21 = sshll.u32 [#allocation6], 4
      %s22 = int_to_ptr.vmem [resolvable:$true] %s21
      %27 = dma.hbm_to_vmem [thread:$0]  %s1, 256, %s22, [#allocation7], 128, 128, 8
    $region5: #{tpu_custom_call.1} parent=1 // pred_fallthru
      _
    // Predicated region
    $region6: #{tpu_custom_call.1} parent=1 // pred_check
      _
    $region7: #{tpu_custom_call.1} parent=1 // pred_check_branch
      %29 = sbr.rel (0) target = $region9
    $region8: #{tpu_custom_call.1} parent=1 // pred_region
      %s31 = ssub.s32 256, 256
      %32 = vsyncadd [#allocation10], %s31
      %s33 = sshll.u32 [#allocation9], 4
      %s34 = int_to_ptr.vmem [resolvable:$true] %s33
      %39 = dma.hbm_to_vmem [thread:$0]  %s2, 256, %s34, [#allocation10], 128, 128, 8
    $region9: #{tpu_custom_call.1} parent=1 // pred_fallthru
      _
    // Predicated region
    $region10: #{tpu_custom_call.1} parent=1 // pred_check
      _
    $region11: #{tpu_custom_call.1} parent=1 // pred_check_branch
      %41 = sbr.rel (0) target = $region13
    $region12: #{tpu_custom_call.1} parent=1 // pred_region
      %s43 = ssub.s32 256, 256
      %44 = vsyncadd [#allocation10], %s43
      %s45 = sshll.u32 [#allocation11], 4
      %s46 = int_to_ptr.vmem [resolvable:$true] %s45
      %51 = dma.hbm_to_vmem [thread:$0]  %s3, 256, %s46, [#allocation10], 128, 128, 8
    $region13: #{tpu_custom_call.1} parent=1 // pred_fallthru
      _
    // Predicated region
    $region14: #{tpu_custom_call.1} parent=1 // pred_check
      _
    $region15: #{tpu_custom_call.1} parent=1 // pred_check_branch
      %53 = sbr.rel (0) target = $region17
    $region16: #{tpu_custom_call.1} parent=1 // pred_region
      %54 = dma.done [#allocation7], 256
    $region17: #{tpu_custom_call.1} parent=1 // pred_fallthru
      _
    // Predicated region
    $region18: #{tpu_custom_call.1} parent=1 // pred_check
      _
    $region19: #{tpu_custom_call.1} parent=1 // pred_check_branch
      %56 = sbr.rel (0) target = $region21
    $region20: #{tpu_custom_call.1} parent=1 // pred_region
      %57 = dma.done [#allocation10], 256
    $region21: #{tpu_custom_call.1} parent=1 // pred_fallthru
      _
    // Predicated region
    $region22: #{tpu_custom_call.1} parent=1 // pred_check
      _
    $region23: #{tpu_custom_call.1} parent=1 // pred_check_branch
      %59 = sbr.rel (0) target = $region25
    $region24: #{tpu_custom_call.1} parent=1 // pred_region
      %60 = dma.done [#allocation10], 256
    $region25: #{tpu_custom_call.1} parent=1 // pred_fallthru
      _
    %p61 = scmp.eq.s32.totalorder 0, 0
    // Predicated region
    $region26: #{tpu_custom_call.1} parent=1 // pred_check
      %p62 = pneg %p61
    $region27: #{tpu_custom_call.1} parent=1 // pred_check_branch
      %64 = sbr.rel (%p62) target = $region29
    $region28: #{tpu_custom_call.1} parent=1 // pred_region
      %v65 = vld [vmem:[#allocation9] sm:$0xff]
      %v66 = vld [vmem:[#allocation9 + $0x8] sm:$0xff]
      %67 = vst [vmem:[#allocation2] sm:$0xff] %v65
      %68 = vst [vmem:[#allocation2 + $0x8] sm:$0xff] %v66
      %v69 = vld [vmem:[#allocation11] sm:$0xff]
      %v70 = vld [vmem:[#allocation11 + $0x8] sm:$0xff]
      %71 = vst [vmem:[#allocation3] sm:$0xff] %v69
      %72 = vst [vmem:[#allocation3 + $0x8] sm:$0xff] %v70
    $region29: #{tpu_custom_call.1} parent=1 // pred_fallthru
      _
    %s73 = sld [smem:[#allocation5]]
    %s74 = scvt.s32.f32 %s73
    %v75 = vld [vmem:[#allocation2] sm:$0xff]
    %v76 = vld [vmem:[#allocation2 + $0x8] sm:$0xff]
    %v77 = vld [vmem:[#allocation3] sm:$0xff]
    %v78 = vld [vmem:[#allocation3 + $0x8] sm:$0xff]
    %v79 = vld [vmem:[#allocation6] sm:$0xff]
    %v80 = vld [vmem:[#allocation6 + $0x8] sm:$0xff]
    %v81 = vstv %s74
    %vm82 = vcmp.gt.f32.partialorder %v75, %v81
    %vm83 = vcmp.gt.f32.partialorder %v76, %v81
    %v84 = vsel %vm82, 1, 0
    %v85 = vsel %vm83, 1, 0
    %v86 = vcvt.s32.f32 %v84
    %v87 = vcvt.s32.f32 %v85
    %v88 = vsub.f32 1.0, %v86
    %v89 = vsub.f32 1.0, %v87
    %v90 = vadd.f32 %v88, %v77
    %v91 = vadd.f32 %v89, %v78
    %v92 = vmul.f32 %v88, 2.0
    %v93 = vmul.f32 %v89, 2.0
    %v94 = vmul.f32 %v92, %v77
    %v95 = vmul.f32 %v93, %v78
    %v96 = vsub.f32 %v90, %v94
    %v97 = vsub.f32 %v91, %v95
    %v98 = vadd.f32 %v75, %v79
    %v99 = vadd.f32 %v76, %v80
    %v100 = vsub.f32 %v98, %v96
    %v101 = vsub.f32 %v99, %v97
    %v102 = vmax.f32 %v100, 0.0
    %v103 = vmax.f32 %v101, 0.0
    %v104 = vmin.f32 %v102, 31.0
    %v105 = vmin.f32 %v103, 31.0
    %106 = vst [vmem:[#allocation12] sm:$0xff] %v86
    %107 = vst [vmem:[#allocation12 + $0x8] sm:$0xff] %v87
    %108 = vst [vmem:[#allocation2] sm:$0xff] %v104
    %109 = vst [vmem:[#allocation2 + $0x8] sm:$0xff] %v105
    %110 = vst [vmem:[#allocation3] sm:$0xff] %v86
    %111 = vst [vmem:[#allocation3 + $0x8] sm:$0xff] %v87
    // Predicated region
    $region30: #{tpu_custom_call.1} parent=1 // pred_check
      %p112 = pneg %p61
    $region31: #{tpu_custom_call.1} parent=1 // pred_check_branch
      %114 = sbr.rel (%p112) target = $region33
    $region32: #{tpu_custom_call.1} parent=1 // pred_region
      %115 = vst [vmem:[#allocation13] sm:$0xff] %v104
      %116 = vst [vmem:[#allocation13 + $0x8] sm:$0xff] %v105
    $region33: #{tpu_custom_call.1} parent=1 // pred_fallthru
      _
    // Predicated region
    $region34: #{tpu_custom_call.1} parent=1 // pred_check
      _
    $region35: #{tpu_custom_call.1} parent=1 // pred_check_branch
      %118 = sbr.rel (0) target = $region37
    $region36: #{tpu_custom_call.1} parent=1 // pred_region
      %s120 = ssub.s32 256, 256
      %121 = vsyncadd [#allocation8], %s120
      %s122 = sshll.u32 [#allocation12], 4
      %s123 = int_to_ptr.vmem [resolvable:$true] %s122
      %128 = dma.vmem_to_hbm [thread:$0]  %s123, 256, %s4, [#allocation8], 128, 128, 8
    $region37: #{tpu_custom_call.1} parent=1 // pred_fallthru
      _
    // Predicated region
    $region38: #{tpu_custom_call.1} parent=1 // pred_check
      _
    $region39: #{tpu_custom_call.1} parent=1 // pred_check_branch
      %130 = sbr.rel (0) target = $region41
    $region40: #{tpu_custom_call.1} parent=1 // pred_region
      %s132 = ssub.s32 256, 256
      %133 = vsyncadd [#allocation14], %s132
      %s134 = sshll.u32 [#allocation13], 4
      %s135 = int_to_ptr.vmem [resolvable:$true] %s134
      %140 = dma.vmem_to_hbm [thread:$0]  %s135, 256, %s5, [#allocation14], 128, 128, 8
    $region41: #{tpu_custom_call.1} parent=1 // pred_fallthru
      _
    // Predicated region
    $region42: #{tpu_custom_call.1} parent=1 // pred_check
      _
    $region43: #{tpu_custom_call.1} parent=1 // pred_check_branch
      %142 = sbr.rel (0) target = $region45
    $region44: #{tpu_custom_call.1} parent=1 // pred_region
      %143 = dma.done [#allocation8], 256
    $region45: #{tpu_custom_call.1} parent=1 // pred_fallthru
      _
    // Predicated region
    $region46: #{tpu_custom_call.1} parent=1 // pred_check
      _
    $region47: #{tpu_custom_call.1} parent=1 // pred_check_branch
      %145 = sbr.rel (0) target = $region49
    $region48: #{tpu_custom_call.1} parent=1 // pred_region
      %146 = dma.done [#allocation14], 256
    $region49: #{tpu_custom_call.1} parent=1 // pred_fallthru
      _
    %147 = vsyncpa [#allocation7], 1
    %148 = vsyncpa [#allocation10], 1
    %149 = vsyncpa [#allocation8], 1
    %150 = vsyncpa [#allocation14], 1

</llo_original>
